<compile_context>
chip_gen: v6e
topology: v6e:2x2x1
jax: 0.10.0
libtpu: 0.0.40
codegen_flags: <defaults>
</compile_context>

<pallas_src>
import functools

import jax
import jax.numpy as jnp
from jax.experimental import pallas as pl
from jax.experimental.pallas import tpu as pltpu


def _cdiv(a, b):
    return -(-a // b)


def _round_up(x, m):
    return _cdiv(x, m) * m


def _auto_n_tile(n_inst, d_feat, x_itemsize, sublane, budget_bytes):
    """Split N into near-equal chunks so instance padding is capped at roughly
    one sublane group per chunk (instead of up to n_tile-1 wasted rows)."""
    max_inst = max(sublane, budget_bytes // max(1, d_feat * x_itemsize))
    n_steps = _cdiv(n_inst, max_inst)
    per_step = _cdiv(n_inst, n_steps)
    return _round_up(per_step, sublane)


def maxmil_kernel(x_ref, w1_ref, b1_ref, w2_ref, b2_ref, o_ref, *,
                  n_valid_last, needs_mask, compute_dtype, act):
    # x_ref:  (b_tile, n_tile, D_feat)  native input dtype; cast to compute_dtype here
    # w1_ref: (D_feat, I_pad)           resident (constant index_map), compute_dtype
    # b1_ref: (1, I_pad)                f32, padded entries are 0
    # w2_ref: (I_pad, C_pad)            resident, compute_dtype, padded rows are 0
    # b2_ref: (1, C_pad)                f32
    # o_ref:  (1, b_tile, C_pad)        f32 running-max accumulator / output
    b_tile, n_tile, d_feat = x_ref.shape
    c_pad = o_ref.shape[-1]
    ni = pl.program_id(1)
    last = pl.num_programs(1) - 1

    @pl.when(ni == 0)
    def _init():
        o_ref[...] = jnp.full(o_ref.shape, -jnp.inf, dtype=o_ref.dtype)

    # First linear: a single big MXU matmul over all bags*instances in this tile.
    x2 = x_ref[...].reshape(b_tile * n_tile, d_feat).astype(compute_dtype)
    h = jnp.dot(x2, w1_ref[...], preferred_element_type=jnp.float32)
    h = h + b1_ref[...]
    if act == "relu":
        h = jnp.maximum(h, 0.0)
    else:  # gelu (tanh form -> EUP); gelu(0)=0 keeps the I_pad padding exact.
        h = jax.nn.gelu(h, approximate=True)
    # Dropout(0.25) is the identity in eval mode.
    # TODO(synk): training-mode dropout not implemented.
    logits = jnp.dot(h.astype(w2_ref.dtype), w2_ref[...],
                     preferred_element_type=jnp.float32)       # (M, C_pad)
    logits = logits.reshape(b_tile, n_tile, c_pad)

    if needs_mask:
        # Only the last instance step contains zero-padded rows; keep the
        # steady-state epilogue select-free and mask only on that step.
        @pl.when(ni != last)
        def _accumulate():
            o_ref[...] = jnp.maximum(o_ref[...], jnp.max(logits, axis=1)[None])

        @pl.when(ni == last)
        def _accumulate_masked_and_finalize():
            inst = jax.lax.broadcasted_iota(jnp.int32, (1, n_tile, 1), 1)
            lm = jnp.where(inst < n_valid_last, logits, -jnp.inf)
            # max_n(logits + b2) == max_n(logits) + b2  (b2 constant over instances)
            o_ref[...] = (jnp.maximum(o_ref[...], jnp.max(lm, axis=1)[None])
                          + b2_ref[...])
    else:
        o_ref[...] = jnp.maximum(o_ref[...], jnp.max(logits, axis=1)[None])

        @pl.when(ni == last)
        def _finalize():
            o_ref[...] = o_ref[...] + b2_ref[...]


def maxmil_forward(x, w1, b1, w2, b2, *, compute_dtype=jnp.bfloat16, act="relu",
                   b_tile=None, n_tile=None, megacore=False,
                   x_tile_budget_bytes=4 * 1024 * 1024,
                   single_buffer_weights=False, vmem_limit_bytes=None):
    """x: (B, N, D_feat); w1: (D_feat, D_inner); w2: (D_inner, n_class);
    b1/b2: (1, D_inner)/(1, n_class). Returns (B, n_class) float32.

    megacore=True keeps >=2 parallel batch grid steps (v7x has 2 TCs); leave it
    False on single-TC v5e/v6e so the matmul M stays near the 256-row target.
    x_tile_budget_bytes: per-buffer x tile budget (double buffered). 4 MiB fits
    every generation's scoped-VMEM default; on v6e it can be raised towards
    8-12 MiB together with vmem_limit_bytes.
    single_buffer_weights=True requests single-buffering (pl.Buffered(1)) for
    the constant-index weight specs; only worthwhile once the weights are large
    (v7x: 64 MiB/TC VMEM), so it is off by default.
    """
    B, N, D_feat = x.shape
    D_inner = w1.shape[1]
    n_class = w2.shape[1]
    cd = jnp.dtype(compute_dtype)

    # Native packed sublane group for the MXU feed (16 rows for bf16, 8 for f32).
    sub = 16 if cd.itemsize < 4 else 8

    if n_tile is None:
        n_tile = _auto_n_tile(N, D_feat, x.dtype.itemsize, sub, x_tile_budget_bytes)
    else:
        n_tile = _round_up(int(n_tile), sub)
    if b_tile is None:
        b_tile = max(1, min(B, 256 // max(1, n_tile)))   # M = b_tile*n_tile ~ 256
        if megacore and B >= 2:
            b_tile = min(b_tile, (B + 1) // 2)           # >=2 parallel steps (v7x)
    else:
        b_tile = max(1, int(b_tile))

    B_pad = _round_up(B, b_tile)
    N_pad = _round_up(N, n_tile)
    C_pad = _round_up(n_class, 128)      # lane-dense output stores
    I_pad = _round_up(D_inner, 128)      # lane-dense hidden (numerically exact)

    # x stays in its native dtype (cast happens in-kernel, hidden under the DMA);
    # pad only when the tile grid actually needs it.
    xp = x
    if (B_pad, N_pad) != (B, N):
        xp = jnp.pad(xp, ((0, B_pad - B), (0, N_pad - N), (0, 0)))

    w1c = jnp.pad(w1, ((0, 0), (0, I_pad - D_inner))).astype(cd)
    b1c = jnp.pad(jnp.reshape(b1, (1, D_inner)).astype(jnp.float32),
                  ((0, 0), (0, I_pad - D_inner)))
    w2c = jnp.pad(w2, ((0, I_pad - D_inner), (0, C_pad - n_class))).astype(cd)
    b2c = jnp.pad(jnp.reshape(b2, (1, n_class)).astype(jnp.float32),
                  ((0, 0), (0, C_pad - n_class)))

    nb = B_pad // b_tile
    nn = N_pad // n_tile
    needs_mask = N_pad != N
    n_valid_last = N - (nn - 1) * n_tile

    w_kw = {"pipeline_mode": pl.Buffered(1)} if single_buffer_weights else {}

    kernel = functools.partial(
        maxmil_kernel, n_valid_last=n_valid_last, needs_mask=needs_mask,
        compute_dtype=cd, act=act)

    out3 = pl.pallas_call(
        kernel,
        out_shape=jax.ShapeDtypeStruct((nb, b_tile, C_pad), jnp.float32),
        grid_spec=pltpu.PrefetchScalarGridSpec(
            num_scalar_prefetch=0,
            grid=(nb, nn),
            in_specs=[
                pl.BlockSpec((b_tile, n_tile, D_feat), lambda bi, ni: (bi, ni, 0)),
                pl.BlockSpec((D_feat, I_pad), lambda bi, ni: (0, 0), **w_kw),
                pl.BlockSpec((1, I_pad), lambda bi, ni: (0, 0), **w_kw),
                pl.BlockSpec((I_pad, C_pad), lambda bi, ni: (0, 0), **w_kw),
                pl.BlockSpec((1, C_pad), lambda bi, ni: (0, 0), **w_kw),
            ],
            out_specs=pl.BlockSpec((1, b_tile, C_pad), lambda bi, ni: (bi, 0, 0)),
        ),
        compiler_params=pltpu.CompilerParams(
            dimension_semantics=("parallel", "arbitrary"),
            vmem_limit_bytes=vmem_limit_bytes,
        ),
    )(xp, w1c, b1c, w2c, b2c)

    return out3.reshape(B_pad, C_pad)[:B, :n_class]


def xavier_normal(key, fan_in, fan_out, dtype=jnp.float32):
    # nn.init.xavier_normal_: std = sqrt(2 / (fan_in + fan_out))
    std = jnp.sqrt(2.0 / (fan_in + fan_out)).astype(dtype)
    return jax.random.normal(key, (fan_in, fan_out), dtype=dtype) * std


def _reference_f32(x, w1, b1, w2, b2):
    h = jnp.maximum(jnp.einsum("bnd,di->bni", x, w1) + b1.reshape(-1), 0.0)
    logits = jnp.einsum("bni,ic->bnc", h, w2) + b2.reshape(-1)
    return jnp.max(logits, axis=1)


def _reference_bf16(x, w1, b1, w2, b2):
    xb, w1b, w2b = (a.astype(jnp.bfloat16) for a in (x, w1, w2))
    h = jnp.einsum("bnd,di->bni", xb, w1b, preferred_element_type=jnp.float32)
    h = jnp.maximum(h + b1.reshape(-1), 0.0)
    logits = jnp.einsum("bni,ic->bnc", h.astype(jnp.bfloat16), w2b,
                        preferred_element_type=jnp.float32) + b2.reshape(-1)
    return jnp.max(logits, axis=1)


if __name__ == "__main__":
    key = jax.random.PRNGKey(0)

    # --- test 1: module-sized shapes (conf.D_feat=128, D_inner=64, n_class=4), B=2, N=16
    B, N, D_feat, D_inner, n_class = 2, 16, 128, 64, 4
    kx, kw1, kw2, k2 = jax.random.split(key, 4)
    x = jax.random.normal(kx, (B, N, D_feat), dtype=jnp.float32)
    w1 = xavier_normal(kw1, D_feat, D_inner)        # stored (in, out) = torch weight.T
    b1 = jnp.zeros((1, D_inner), jnp.float32)       # initialize_weights: zero bias
    w2 = xavier_normal(kw2, D_inner, n_class)
    b2 = jnp.zeros((1, n_class), jnp.float32)

    y_ref = _reference_f32(x, w1, b1, w2, b2)

    # exact f32 path (single grid step, no instance padding -> no mask)
    y_f32 = jax.block_until_ready(
        maxmil_forward(x, w1, b1, w2, b2, compute_dtype=jnp.float32))
    assert y_f32.shape == (B, n_class)
    assert jnp.allclose(y_f32, y_ref, atol=1e-5, rtol=1e-5)

    # default bf16 MXU path (f32 accumulation)
    y_bf16 = jax.block_until_ready(maxmil_forward(x, w1, b1, w2, b2))
    assert jnp.allclose(y_bf16, _reference_bf16(x, w1, b1, w2, b2), atol=1e-2, rtol=1e-2)
    assert jnp.allclose(y_bf16, y_ref, atol=5e-2, rtol=5e-2)

    # --- test 2: odd shapes -> batch-tile padding, multi-step running max,
    #             last-step-only -inf masking of padded instances, fused b2 fold.
    B2, N2, D2, I2, C2 = 3, 40, 64, 96, 3
    kx2, kw3, kw4, kb3, kb4 = jax.random.split(k2, 5)
    x2 = jax.random.normal(kx2, (B2, N2, D2), dtype=jnp.float32)
    w3 = xavier_normal(kw3, D2, I2)
    b3 = 0.1 * jax.random.normal(kb3, (1, I2), dtype=jnp.float32)
    w4 = xavier_normal(kw4, I2, C2)
    b4 = 0.1 * jax.random.normal(kb4, (1, C2), dtype=jnp.float32)

    y2_ref = _reference_f32(x2, w3, b3, w4, b4)
    y2 = jax.block_until_ready(
        maxmil_forward(x2, w3, b3, w4, b4, compute_dtype=jnp.float32,
                       b_tile=2, n_tile=16))
    assert y2.shape == (B2, C2)
    assert jnp.allclose(y2, y2_ref, atol=1e-4, rtol=1e-4)

    # same shapes with the auto-tiled bf16 path (single padded instance tile + mask)
    y2b = jax.block_until_ready(maxmil_forward(x2, w3, b3, w4, b4))
    assert jnp.allclose(y2b, _reference_bf16(x2, w3, b3, w4, b4), atol=2e-2, rtol=2e-2)

    # --- test 3: N an exact multiple of n_tile -> mask-free multi-step running max
    #             with the separate b2 finalize branch.
    B3, N3, D3, I3, C3 = 4, 32, 64, 32, 5
    kx3, kw5, kw6, kb5, kb6 = jax.random.split(kx2, 5)
    x3 = jax.random.normal(kx3, (B3, N3, D3), dtype=jnp.float32)
    w5 = xavier_normal(kw5, D3, I3)
    b5 = 0.1 * jax.random.normal(kb5, (1, I3), dtype=jnp.float32)
    w6 = xavier_normal(kw6, I3, C3)
    b6 = 0.1 * jax.random.normal(kb6, (1, C3), dtype=jnp.float32)

    y3 = jax.block_until_ready(
        maxmil_forward(x3, w5, b5, w6, b6, compute_dtype=jnp.float32, n_tile=16))
    assert y3.shape == (B3, C3)
    assert jnp.allclose(y3, _reference_f32(x3, w5, b5, w6, b6), atol=1e-4, rtol=1e-4)

    print("KERNEL_OK")
</pallas_src>

<mosaic_0001>
module attributes {stable_mosaic.version = 11 : i64} {
  func.func @maxmil_kernel(%arg0: i32, %arg1: i32, %arg2: memref<2x16x128xf32, #tpu.memory_space<vmem>>, %arg3: memref<128x128xf32, #tpu.memory_space<vmem>>, %arg4: memref<1x128xf32, #tpu.memory_space<vmem>>, %arg5: memref<128x128xf32, #tpu.memory_space<vmem>>, %arg6: memref<1x128xf32, #tpu.memory_space<vmem>>, %arg7: memref<1x2x128xf32, #tpu.memory_space<vmem>>) attributes {dimension_semantics = [#tpu.dimension_semantics<parallel>, #tpu.dimension_semantics<arbitrary>], iteration_bounds = array<i64: 1, 1>, scalar_prefetch = 0 : i64, scratch_operands = 0 : i64, tpu.core_type = #tpu.core_type<tc>, window_params = [{transform_indices = @transform_0, window_bounds = array<i64: 2, 16, 128>}, {pipeline_mode = #tpu.pipeline_mode<synchronous>, transform_indices = @transform_1, window_bounds = array<i64: 128, 128>}, {pipeline_mode = #tpu.pipeline_mode<synchronous>, transform_indices = @transform_2, window_bounds = array<i64: 1, 128>}, {pipeline_mode = #tpu.pipeline_mode<synchronous>, transform_indices = @transform_3, window_bounds = array<i64: 128, 128>}, {pipeline_mode = #tpu.pipeline_mode<synchronous>, transform_indices = @transform_4, window_bounds = array<i64: 1, 128>}, {transform_indices = @transform_5, window_bounds = array<i64: 1, 2, 128>}]} {
    %c0_i32 = arith.constant 0 : i32
    %0 = arith.cmpi eq, %arg1, %c0_i32 : i32
    %1 = arith.extui %0 : i1 to i32
    %c0_i32_0 = arith.constant 0 : i32
    %2 = arith.cmpi ne, %1, %c0_i32_0 : i32
    scf.if %2 {
      %cst_20 = arith.constant 0xFF800000 : f32
      %23 = vector.broadcast %cst_20 : f32 to vector<1x2x128xf32>
      %c0_21 = arith.constant 0 : index
      %c0_22 = arith.constant 0 : index
      %c0_23 = arith.constant 0 : index
      %24 = vector.load %arg7[%c0_21, %c0_22, %c0_23] : memref<1x2x128xf32, #tpu.memory_space<vmem>>, vector<1x2x128xf32>
      tpu.vector_store %arg7[%c0_21, %c0_22, %c0_23], %23 {strides = array<i32>} : memref<1x2x128xf32, #tpu.memory_space<vmem>>, vector<1x2x128xf32>,
    } else {
    }
    %c0 = arith.constant 0 : index
    %c0_1 = arith.constant 0 : index
    %c0_2 = arith.constant 0 : index
    %3 = vector.load %arg2[%c0, %c0_1, %c0_2] : memref<2x16x128xf32, #tpu.memory_space<vmem>>, vector<2x16x128xf32>
    %4 = vector.shape_cast %3 : vector<2x16x128xf32> to vector<32x128xf32>
    %c0_3 = arith.constant 0 : index
    %c0_4 = arith.constant 0 : index
    %5 = vector.load %arg3[%c0_3, %c0_4] : memref<128x128xf32, #tpu.memory_space<vmem>>, vector<128x128xf32>
    %cst = arith.constant dense<0.000000e+00> : vector<32x128xf32>
    %6 = tpu.matmul %4, %5, %cst {dimension_numbers = #tpu.dot_dimension_numbers<[1], [0], [0], [1], [0, 0, 1, 1], [], []>} : vector<32x128xf32>, vector<128x128xf32>, vector<32x128xf32> -> vector<32x128xf32>
    %c0_5 = arith.constant 0 : index
    %c0_6 = arith.constant 0 : index
    %7 = vector.load %arg4[%c0_5, %c0_6] : memref<1x128xf32, #tpu.memory_space<vmem>>, vector<1x128xf32>
    %8 = vector.broadcast %7 : vector<1x128xf32> to vector<32x128xf32>
    %9 = arith.addf %6, %8 : vector<32x128xf32>
    %cst_7 = arith.constant 0.000000e+00 : f32
    %10 = vector.broadcast %cst_7 : f32 to vector<32x128xf32>
    %11 = arith.maximumf %9, %10 : vector<32x128xf32>
    %c0_8 = arith.constant 0 : index
    %c0_9 = arith.constant 0 : index
    %12 = vector.load %arg5[%c0_8, %c0_9] : memref<128x128xf32, #tpu.memory_space<vmem>>, vector<128x128xf32>
    %cst_10 = arith.constant dense<0.000000e+00> : vector<32x128xf32>
    %13 = tpu.matmul %11, %12, %cst_10 {dimension_numbers = #tpu.dot_dimension_numbers<[1], [0], [0], [1], [0, 0, 1, 1], [], []>} : vector<32x128xf32>, vector<128x128xf32>, vector<32x128xf32> -> vector<32x128xf32>
    %14 = vector.shape_cast %13 : vector<32x128xf32> to vector<2x16x128xf32>
    %c0_11 = arith.constant 0 : index
    %c0_12 = arith.constant 0 : index
    %c0_13 = arith.constant 0 : index
    %15 = vector.load %arg7[%c0_11, %c0_12, %c0_13] : memref<1x2x128xf32, #tpu.memory_space<vmem>>, vector<1x2x128xf32>
    %cst_14 = arith.constant dense<0xFF800000> : vector<2x128xf32>
    %16 = vector.multi_reduction <maximumf>, %14, %cst_14 [1] : vector<2x16x128xf32> to vector<2x128xf32>
    %17 = vector.shape_cast %16 : vector<2x128xf32> to vector<1x2x128xf32>
    %18 = arith.maximumf %15, %17 : vector<1x2x128xf32>
    %c0_15 = arith.constant 0 : index
    %c0_16 = arith.constant 0 : index
    %c0_17 = arith.constant 0 : index
    %19 = vector.load %arg7[%c0_15, %c0_16, %c0_17] : memref<1x2x128xf32, #tpu.memory_space<vmem>>, vector<1x2x128xf32>
    tpu.vector_store %arg7[%c0_15, %c0_16, %c0_17], %18 {strides = array<i32>} : memref<1x2x128xf32, #tpu.memory_space<vmem>>, vector<1x2x128xf32>,
    %c0_i32_18 = arith.constant 0 : i32
    %20 = arith.cmpi eq, %arg1, %c0_i32_18 : i32
    %21 = arith.extui %20 : i1 to i32
    %c0_i32_19 = arith.constant 0 : i32
    %22 = arith.cmpi ne, %21, %c0_i32_19 : i32
    scf.if %22 {
      %c0_20 = arith.constant 0 : index
      %c0_21 = arith.constant 0 : index
      %c0_22 = arith.constant 0 : index
      %23 = vector.load %arg7[%c0_20, %c0_21, %c0_22] : memref<1x2x128xf32, #tpu.memory_space<vmem>>, vector<1x2x128xf32>
      %c0_23 = arith.constant 0 : index
      %c0_24 = arith.constant 0 : index
      %24 = vector.load %arg6[%c0_23, %c0_24] : memref<1x128xf32, #tpu.memory_space<vmem>>, vector<1x128xf32>
      %25 = vector.shape_cast %24 : vector<1x128xf32> to vector<1x1x128xf32>
      %26 = vector.broadcast %25 : vector<1x1x128xf32> to vector<1x2x128xf32>
      %27 = arith.addf %23, %26 : vector<1x2x128xf32>
      %c0_25 = arith.constant 0 : index
      %c0_26 = arith.constant 0 : index
      %c0_27 = arith.constant 0 : index
      %28 = vector.load %arg7[%c0_25, %c0_26, %c0_27] : memref<1x2x128xf32, #tpu.memory_space<vmem>>, vector<1x2x128xf32>
      tpu.vector_store %arg7[%c0_25, %c0_26, %c0_27], %27 {strides = array<i32>} : memref<1x2x128xf32, #tpu.memory_space<vmem>>, vector<1x2x128xf32>,
    } else {
    }
    return
  }
  func.func @transform_0(%arg0: i32, %arg1: i32) -> (i32, i32, i32) {
    %c0_i32 = arith.constant 0 : i32
    %c0_i32_0 = arith.constant 0 : i32
    return %arg0, %arg1, %c0_i32 : i32, i32, i32
  }
  func.func @transform_1(%arg0: i32, %arg1: i32) -> (i32, i32) {
    %c0_i32 = arith.constant 0 : i32
    %c0_i32_0 = arith.constant 0 : i32
    %c0_i32_1 = arith.constant 0 : i32
    return %c0_i32, %c0_i32_0 : i32, i32
  }
  func.func @transform_2(%arg0: i32, %arg1: i32) -> (i32, i32) {
    %c0_i32 = arith.constant 0 : i32
    %c0_i32_0 = arith.constant 0 : i32
    %c0_i32_1 = arith.constant 0 : i32
    return %c0_i32, %c0_i32_0 : i32, i32
  }
  func.func @transform_3(%arg0: i32, %arg1: i32) -> (i32, i32) {
    %c0_i32 = arith.constant 0 : i32
    %c0_i32_0 = arith.constant 0 : i32
    %c0_i32_1 = arith.constant 0 : i32
    return %c0_i32, %c0_i32_0 : i32, i32
  }
  func.func @transform_4(%arg0: i32, %arg1: i32) -> (i32, i32) {
    %c0_i32 = arith.constant 0 : i32
    %c0_i32_0 = arith.constant 0 : i32
    %c0_i32_1 = arith.constant 0 : i32
    return %c0_i32, %c0_i32_0 : i32, i32
  }
  func.func @transform_5(%arg0: i32, %arg1: i32) -> (i32, i32, i32) {
    %c0_i32 = arith.constant 0 : i32
    %c0_i32_0 = arith.constant 0 : i32
    %c0_i32_1 = arith.constant 0 : i32
    return %arg0, %c0_i32, %c0_i32_0 : i32, i32, i32
  }
}

</mosaic_0001>

<llo_original>
// kernel: tpu_custom_call.1
$region0: #{tpu_custom_call.1}
  #allocation0 [shape = 'u32[]', space=smem, size = 0x4, offset = 0x4, fixed_abs, tag = 'smem constant byte address 0x4 - core index']
  #allocation1 [shape = 'u32[144,128]{1,0:T(1,128)}', space=vmem, size = 0x12000, scoped, tag = 'internal scratch']
  %s0 = inlined_call_operand.hbm [shape: f32[2,16,128], index: 0, kind: input, shape index: {}]
  %s1 = inlined_call_operand.hbm [shape: f32[128,128], index: 1, kind: input, shape index: {}]
  %s2 = inlined_call_operand.vmem [shape: f32[1,128], index: 2, kind: input, shape index: {}]
  %s3 = inlined_call_operand.hbm [shape: f32[128,128], index: 3, kind: input, shape index: {}]
  %s4 = inlined_call_operand.vmem [shape: f32[1,128], index: 4, kind: input, shape index: {}]
  %s5 = inlined_call_operand.hbm [shape: f32[1,2,128], index: 5, kind: output, shape index: {}]
  %s6 = sld [smem:[#allocation0]]
  $region50: #{tpu_custom_call.1} parent=0
    _
  %s8 = ssub.s32 1, %s6
  %s9 = scalar_select 0, %s8, %s6
  $region1: #{tpu_custom_call.1} parent=0
    #allocation2 [shape = 'u8[16384]{0}', space=vmem, size = 0x4000, scoped, tag = 'input window, operand 0, single buffered']
    #allocation3 [shape = 's32[1]{0}', space=sflag, size = 0x4, scoped, tag = 'scoped memory for tpu_custom_call.1']
    #allocation4 [shape = 's32[1]{0}', space=sflag, size = 0x4, scoped, tag = 'scoped memory for tpu_custom_call.1']
    #allocation5 [shape = 'u8[65536]{0}', space=vmem, size = 0x10000, scoped, tag = 'input window, operand 1, single buffered']
    #allocation6 [shape = 's32[1]{0}', space=sflag, size = 0x4, scoped, tag = 'scoped memory for tpu_custom_call.1']
    #allocation7 [shape = 'u8[65536]{0}', space=vmem, size = 0x10000, scoped, tag = 'input window, operand 3, single buffered']
    #allocation8 [shape = 'u8[1024]{0}', space=vmem, size = 0x400, scoped, tag = 'output window, operand 0, single buffered']
    %10 = vsyncpa [#allocation3], 0
    %11 = vsyncpa [#allocation6], 0
    %12 = vsyncpa [#allocation4], 0
    // Predicated region
    $region2: #{tpu_custom_call.1} parent=1 // pred_check
      _
    $region3: #{tpu_custom_call.1} parent=1 // pred_check_branch
      %14 = sbr.rel (0) target = $region5
    $region4: #{tpu_custom_call.1} parent=1 // pred_region
      %s16 = ssub.s32 512, 512
      %17 = vsyncadd [#allocation3], %s16
      %s18 = sshll.u32 [#allocation2], 4
      %s19 = int_to_ptr.vmem [resolvable:$true] %s18
      %24 = dma.hbm_to_vmem [thread:$0]  %s0, 512, %s19, [#allocation3], 128, 128, 8
    $region5: #{tpu_custom_call.1} parent=1 // pred_fallthru
      _
    // Predicated region
    $region6: #{tpu_custom_call.1} parent=1 // pred_check
      _
    $region7: #{tpu_custom_call.1} parent=1 // pred_check_branch
      %26 = sbr.rel (0) target = $region9
    $region8: #{tpu_custom_call.1} parent=1 // pred_region
      %s28 = ssub.s32 2048, 2048
      %29 = vsyncadd [#allocation6], %s28
      %s30 = sshll.u32 [#allocation5], 4
      %s31 = int_to_ptr.vmem [resolvable:$true] %s30
      %36 = dma.hbm_to_vmem [thread:$0]  %s1, 2048, %s31, [#allocation6], 128, 128, 8
    $region9: #{tpu_custom_call.1} parent=1 // pred_fallthru
      _
    // Predicated region
    $region10: #{tpu_custom_call.1} parent=1 // pred_check
      _
    $region11: #{tpu_custom_call.1} parent=1 // pred_check_branch
      %38 = sbr.rel (0) target = $region13
    $region12: #{tpu_custom_call.1} parent=1 // pred_region
      _
    $region13: #{tpu_custom_call.1} parent=1 // pred_fallthru
      _
    // Predicated region
    $region14: #{tpu_custom_call.1} parent=1 // pred_check
      _
    $region15: #{tpu_custom_call.1} parent=1 // pred_check_branch
      %40 = sbr.rel (0) target = $region17
    $region16: #{tpu_custom_call.1} parent=1 // pred_region
      %s42 = ssub.s32 2048, 2048
      %43 = vsyncadd [#allocation6], %s42
      %s44 = sshll.u32 [#allocation7], 4
      %s45 = int_to_ptr.vmem [resolvable:$true] %s44
      %50 = dma.hbm_to_vmem [thread:$0]  %s3, 2048, %s45, [#allocation6], 128, 128, 8
    $region17: #{tpu_custom_call.1} parent=1 // pred_fallthru
      _
    // Predicated region
    $region18: #{tpu_custom_call.1} parent=1 // pred_check
      _
    $region19: #{tpu_custom_call.1} parent=1 // pred_check_branch
      %52 = sbr.rel (0) target = $region21
    $region20: #{tpu_custom_call.1} parent=1 // pred_region
      _
    $region21: #{tpu_custom_call.1} parent=1 // pred_fallthru
      _
    // Predicated region
    $region22: #{tpu_custom_call.1} parent=1 // pred_check
      _
    $region23: #{tpu_custom_call.1} parent=1 // pred_check_branch
      %54 = sbr.rel (0) target = $region25
    $region24: #{tpu_custom_call.1} parent=1 // pred_region
      %55 = dma.done [#allocation3], 512
    $region25: #{tpu_custom_call.1} parent=1 // pred_fallthru
      _
    // Predicated region
    $region26: #{tpu_custom_call.1} parent=1 // pred_check
      _
    $region27: #{tpu_custom_call.1} parent=1 // pred_check_branch
      %57 = sbr.rel (0) target = $region29
    $region28: #{tpu_custom_call.1} parent=1 // pred_region
      %58 = dma.done [#allocation6], 2048
    $region29: #{tpu_custom_call.1} parent=1 // pred_fallthru
      _
    // Predicated region
    $region30: #{tpu_custom_call.1} parent=1 // pred_check
      _
    $region31: #{tpu_custom_call.1} parent=1 // pred_check_branch
      %60 = sbr.rel (0) target = $region33
    $region32: #{tpu_custom_call.1} parent=1 // pred_region
      %61 = dma.done [#allocation6], 2048
    $region33: #{tpu_custom_call.1} parent=1 // pred_fallthru
      _
    %p62 = scmp.eq.s32.totalorder 0, 0
    // Predicated region
    $region34: #{tpu_custom_call.1} parent=1 // pred_check
      %p63 = pneg %p62
    $region35: #{tpu_custom_call.1} parent=1 // pred_check_branch
      %65 = sbr.rel (%p63) target = $region37
    $region36: #{tpu_custom_call.1} parent=1 // pred_region
      %66 = vst [vmem:[#allocation8] sm:$0x3] -inf
    $region37: #{tpu_custom_call.1} parent=1 // pred_fallthru
      _
    %v67 = vld [vmem:[#allocation2] sm:$0xff]
    %v68 = vld [vmem:[#allocation2 + $0x8] sm:$0xff]
    %v69 = vld [vmem:[#allocation2 + $0x10] sm:$0xff]
    %v70 = vld [vmem:[#allocation2 + $0x18] sm:$0xff]
    %v71 = vld [vmem:[#allocation5] sm:$0xff]
    %v72 = vld [vmem:[#allocation5 + $0x8] sm:$0xff]
    %v73 = vld [vmem:[#allocation5 + $0x10] sm:$0xff]
    %v74 = vld [vmem:[#allocation5 + $0x18] sm:$0xff]
    %v75 = vld [vmem:[#allocation5 + $0x20] sm:$0xff]
    %v76 = vld [vmem:[#allocation5 + $0x28] sm:$0xff]
    %v77 = vld [vmem:[#allocation5 + $0x30] sm:$0xff]
    %v78 = vld [vmem:[#allocation5 + $0x38] sm:$0xff]
    %v79 = vld [vmem:[#allocation5 + $0x40] sm:$0xff]
    %v80 = vld [vmem:[#allocation5 + $0x48] sm:$0xff]
    %v81 = vld [vmem:[#allocation5 + $0x50] sm:$0xff]
    %v82 = vld [vmem:[#allocation5 + $0x58] sm:$0xff]
    %v83 = vld [vmem:[#allocation5 + $0x60] sm:$0xff]
    %v84 = vld [vmem:[#allocation5 + $0x68] sm:$0xff]
    %v85 = vld [vmem:[#allocation5 + $0x70] sm:$0xff]
    %v86 = vld [vmem:[#allocation5 + $0x78] sm:$0xff]
    %v87 = vld [vmem:[%s2] sm:$0x1]
    %v89 = vlaneseq
    %v90 = vshrl.u32 %v89, 7
    %v91 = vsub.s32 0, %v90
    %v92 = vrot.slane %v87, %v91
    %94 = vmatprep.subr.mxu0 0.0
    %95 = vmatpush1.msra.mxu0 %v86
    %96 = vmatprep.subr.mxu0 0.0
    %97 = vmatpush1.msra.mxu0 %v85
    %98 = vmatprep.subr.mxu0 0.0
    %99 = vmatpush1.msra.mxu0 %v84
    %100 = vmatprep.subr.mxu0 0.0
    %101 = vmatpush1.msra.mxu0 %v83
    %102 = vmatprep.subr.mxu0 0.0
    %103 = vmatpush1.msra.mxu0 %v82
    %104 = vmatprep.subr.mxu0 0.0
    %105 = vmatpush1.msra.mxu0 %v81
    %106 = vmatprep.subr.mxu0 0.0
    %107 = vmatpush1.msra.mxu0 %v80
    %108 = vmatprep.subr.mxu0 0.0
    %109 = vmatpush1.msra.mxu0 %v79
    %110 = vmatprep.subr.mxu0 0.0
    %111 = vmatpush1.msra.mxu0 %v78
    %112 = vmatprep.subr.mxu0 0.0
    %113 = vmatpush1.msra.mxu0 %v77
    %114 = vmatprep.subr.mxu0 0.0
    %115 = vmatpush1.msra.mxu0 %v76
    %116 = vmatprep.subr.mxu0 0.0
    %117 = vmatpush1.msra.mxu0 %v75
    %118 = vmatprep.subr.mxu0 0.0
    %119 = vmatpush1.msra.mxu0 %v74
    %120 = vmatprep.subr.mxu0 0.0
    %121 = vmatpush1.msra.mxu0 %v73
    %122 = vmatprep.subr.mxu0 0.0
    %123 = vmatpush1.msra.mxu0 %v72
    %124 = vmatprep.subr.mxu0 0.0
    %125 = vmatpush1.msra.mxu0 %v71
    %126 = vmatprep.subr.mxu0 0.0
    %127 = vmatpush2.msra.mxu0 0.0
    %128 = vmatprep.subr.mxu0 0.0
    %129 = vmatpush2.msra.mxu0 0.0
    %130 = vmatprep.subr.mxu0 0.0
    %131 = vmatpush2.msra.mxu0 0.0
    %132 = vmatprep.subr.mxu0 0.0
    %133 = vmatpush2.msra.mxu0 0.0
    %134 = vmatprep.subr.mxu0 0.0
    %135 = vmatpush2.msra.mxu0 0.0
    %136 = vmatprep.subr.mxu0 0.0
    %137 = vmatpush2.msra.mxu0 0.0
    %138 = vmatprep.subr.mxu0 0.0
    %139 = vmatpush2.msra.mxu0 0.0
    %140 = vmatprep.subr.mxu0 0.0
    %141 = vmatpush2.msra.mxu0 0.0
    %142 = vmatprep.subr.mxu0 0.0
    %143 = vmatpush2.msra.mxu0 0.0
    %144 = vmatprep.subr.mxu0 0.0
    %145 = vmatpush2.msra.mxu0 0.0
    %146 = vmatprep.subr.mxu0 0.0
    %147 = vmatpush2.msra.mxu0 0.0
    %148 = vmatprep.subr.mxu0 0.0
    %149 = vmatpush2.msra.mxu0 0.0
    %150 = vmatprep.subr.mxu0 0.0
    %151 = vmatpush2.msra.mxu0 0.0
    %152 = vmatprep.subr.mxu0 0.0
    %153 = vmatpush2.msra.mxu0 0.0
    %154 = vmatprep.subr.mxu0 0.0
    %155 = vmatpush2.msra.mxu0 0.0
    %156 = vmatprep.subr.mxu0 0.0
    %157 = vmatpush2.msra.mxu0 0.0
    %158 = vmatprep.mubr.f32.mxu0 0.0
    %159 = vmatmul.mubr.f32.gmra.mxu0 %v67
    %v160 = vpop.f32.mrf.mxu0
    %v161 = vadd.f32 %v92, %v160
    %v162 = vpop.f32.mrf.mxu0
    %163 = vmatprep.mubr.f32.mxu0 0.0
    %164 = vmatmul.mubr.f32.gmra.mxu0 %v68
    %v165 = vpop.f32.mrf.mxu0
    %v166 = vadd.f32 %v92, %v165
    %v167 = vpop.f32.mrf.mxu0
    %168 = vmatprep.mubr.f32.mxu0 0.0
    %169 = vmatmul.mubr.f32.gmra.mxu0 %v69
    %v170 = vpop.f32.mrf.mxu0
    %v171 = vadd.f32 %v92, %v170
    %v172 = vpop.f32.mrf.mxu0
    %173 = vmatprep.mubr.f32.mxu0 0.0
    %174 = vmatmul.mubr.f32.gmra.mxu0 %v70
    %v175 = vpop.f32.mrf.mxu0
    %v176 = vadd.f32 %v92, %v175
    %v177 = vpop.f32.mrf.mxu0
    %178 = vdwg.mxu0
    %v179 = vmax.f32 %v161, 0.0
    %v180 = vmax.f32 %v166, 0.0
    %v181 = vmax.f32 %v171, 0.0
    %v182 = vmax.f32 %v176, 0.0
    %v183 = vld [vmem:[#allocation7] sm:$0xff]
    %v184 = vld [vmem:[#allocation7 + $0x8] sm:$0xff]
    %v185 = vld [vmem:[#allocation7 + $0x10] sm:$0xff]
    %v186 = vld [vmem:[#allocation7 + $0x18] sm:$0xff]
    %v187 = vld [vmem:[#allocation7 + $0x20] sm:$0xff]
    %v188 = vld [vmem:[#allocation7 + $0x28] sm:$0xff]
    %v189 = vld [vmem:[#allocation7 + $0x30] sm:$0xff]
    %v190 = vld [vmem:[#allocation7 + $0x38] sm:$0xff]
    %v191 = vld [vmem:[#allocation7 + $0x40] sm:$0xff]
    %v192 = vld [vmem:[#allocation7 + $0x48] sm:$0xff]
    %v193 = vld [vmem:[#allocation7 + $0x50] sm:$0xff]
    %v194 = vld [vmem:[#allocation7 + $0x58] sm:$0xff]
    %v195 = vld [vmem:[#allocation7 + $0x60] sm:$0xff]
    %v196 = vld [vmem:[#allocation7 + $0x68] sm:$0xff]
    %v197 = vld [vmem:[#allocation7 + $0x70] sm:$0xff]
    %v198 = vld [vmem:[#allocation7 + $0x78] sm:$0xff]
    %199 = vmatprep.subr.mxu0 0.0
    %200 = vmatpush1.msra.mxu0 %v198
    %201 = vmatprep.subr.mxu0 0.0
    %202 = vmatpush1.msra.mxu0 %v197
    %203 = vmatprep.subr.mxu0 0.0
    %204 = vmatpush1.msra.mxu0 %v196
    %205 = vmatprep.subr.mxu0 0.0
    %206 = vmatpush1.msra.mxu0 %v195
    %207 = vmatprep.subr.mxu0 0.0
    %208 = vmatpush1.msra.mxu0 %v194
    %209 = vmatprep.subr.mxu0 0.0
    %210 = vmatpush1.msra.mxu0 %v193
    %211 = vmatprep.subr.mxu0 0.0
    %212 = vmatpush1.msra.mxu0 %v192
    %213 = vmatprep.subr.mxu0 0.0
    %214 = vmatpush1.msra.mxu0 %v191
    %215 = vmatprep.subr.mxu0 0.0
    %216 = vmatpush1.msra.mxu0 %v190
    %217 = vmatprep.subr.mxu0 0.0
    %218 = vmatpush1.msra.mxu0 %v189
    %219 = vmatprep.subr.mxu0 0.0
    %220 = vmatpush1.msra.mxu0 %v188
    %221 = vmatprep.subr.mxu0 0.0
    %222 = vmatpush1.msra.mxu0 %v187
    %223 = vmatprep.subr.mxu0 0.0
    %224 = vmatpush1.msra.mxu0 %v186
    %225 = vmatprep.subr.mxu0 0.0
    %226 = vmatpush1.msra.mxu0 %v185
    %227 = vmatprep.subr.mxu0 0.0
    %228 = vmatpush1.msra.mxu0 %v184
    %229 = vmatprep.subr.mxu0 0.0
    %230 = vmatpush1.msra.mxu0 %v183
    %231 = vmatprep.subr.mxu0 0.0
    %232 = vmatpush2.msra.mxu0 0.0
    %233 = vmatprep.subr.mxu0 0.0
    %234 = vmatpush2.msra.mxu0 0.0
    %235 = vmatprep.subr.mxu0 0.0
    %236 = vmatpush2.msra.mxu0 0.0
    %237 = vmatprep.subr.mxu0 0.0
    %238 = vmatpush2.msra.mxu0 0.0
    %239 = vmatprep.subr.mxu0 0.0
    %240 = vmatpush2.msra.mxu0 0.0
    %241 = vmatprep.subr.mxu0 0.0
    %242 = vmatpush2.msra.mxu0 0.0
    %243 = vmatprep.subr.mxu0 0.0
    %244 = vmatpush2.msra.mxu0 0.0
    %245 = vmatprep.subr.mxu0 0.0
    %246 = vmatpush2.msra.mxu0 0.0
    %247 = vmatprep.subr.mxu0 0.0
    %248 = vmatpush2.msra.mxu0 0.0
    %249 = vmatprep.subr.mxu0 0.0
    %250 = vmatpush2.msra.mxu0 0.0
    %251 = vmatprep.subr.mxu0 0.0
    %252 = vmatpush2.msra.mxu0 0.0
    %253 = vmatprep.subr.mxu0 0.0
    %254 = vmatpush2.msra.mxu0 0.0
    %255 = vmatprep.subr.mxu0 0.0
    %256 = vmatpush2.msra.mxu0 0.0
    %257 = vmatprep.subr.mxu0 0.0
    %258 = vmatpush2.msra.mxu0 0.0
    %259 = vmatprep.subr.mxu0 0.0
    %260 = vmatpush2.msra.mxu0 0.0
    %261 = vmatprep.subr.mxu0 0.0
    %262 = vmatpush2.msra.mxu0 0.0
    %263 = vmatprep.mubr.f32.mxu0 0.0
    %264 = vmatmul.mubr.f32.gmra.mxu0 %v179
    %v265 = vpop.f32.mrf.mxu0
    %v266 = vadd.f32 0.0, %v265
    %v267 = vpop.f32.mrf.mxu0
    %268 = vmatprep.mubr.f32.mxu0 0.0
    %269 = vmatmul.mubr.f32.gmra.mxu0 %v180
    %v270 = vpop.f32.mrf.mxu0
    %v271 = vadd.f32 0.0, %v270
    %v272 = vpop.f32.mrf.mxu0
    %273 = vmatprep.mubr.f32.mxu0 0.0
    %274 = vmatmul.mubr.f32.gmra.mxu0 %v181
    %v275 = vpop.f32.mrf.mxu0
    %v276 = vadd.f32 0.0, %v275
    %v277 = vpop.f32.mrf.mxu0
    %278 = vmatprep.mubr.f32.mxu0 0.0
    %279 = vmatmul.mubr.f32.gmra.mxu0 %v182
    %v280 = vpop.f32.mrf.mxu0
    %v281 = vadd.f32 0.0, %v280
    %v282 = vpop.f32.mrf.mxu0
    %283 = vdwg.mxu0
    %v284 = vld [vmem:[#allocation8] sm:$0x3]
    %v285 = vmax.f32 %v266, %v271
    %v286 = vrot.slane %v285, 4
    %v287 = vmax.f32 %v285, %v286
    %v288 = vrot.slane %v287, 2
    %v289 = vmax.f32 %v287, %v288
    %v290 = vrot.slane %v289, 1
    %v291 = vmax.f32 %v289, %v290
    %v292 = vmax.f32 %v276, %v281
    %v293 = vrot.slane %v292, 4
    %v294 = vmax.f32 %v292, %v293
    %v295 = vrot.slane %v294, 2
    %v296 = vmax.f32 %v294, %v295
    %v297 = vrot.slane %v296, 1
    %v298 = vmax.f32 %v296, %v297
    %vm301 = vcmask 1041409
    %v302 = vsel %vm301, %v298, %v291
    %v304 = vmax.f32 %v284, %v302
    %305 = vst [vmem:[#allocation8] sm:$0x3] %v304
    // Predicated region
    $region38: #{tpu_custom_call.1} parent=1 // pred_check
      %p306 = pneg %p62
    $region39: #{tpu_custom_call.1} parent=1 // pred_check_branch
      %308 = sbr.rel (%p306) target = $region41
    $region40: #{tpu_custom_call.1} parent=1 // pred_region
      %v309 = vld [vmem:[#allocation8] sm:$0x3]
      %v310 = vld [vmem:[%s4] sm:$0x1]
      %v312 = vlaneseq
      %v313 = vshrl.u32 %v312, 7
      %v314 = vsub.s32 0, %v313
      %v315 = vrot.slane %v310, %v314
      %v317 = vadd.f32 %v309, %v315
      %318 = vst [vmem:[#allocation8] sm:$0x3] %v317
    $region41: #{tpu_custom_call.1} parent=1 // pred_fallthru
      _
    // Predicated region
    $region42: #{tpu_custom_call.1} parent=1 // pred_check
      _
    $region43: #{tpu_custom_call.1} parent=1 // pred_check_branch
      %320 = sbr.rel (0) target = $region45
    $region44: #{tpu_custom_call.1} parent=1 // pred_region
      %s322 = ssub.s32 32, 32
      %323 = vsyncadd [#allocation4], %s322
      %s325 = sshll.u32 [#allocation8], 4
      %s326 = int_to_ptr.vmem [resolvable:$true] %s325
      %328 = dma.vmem_to_hbm [thread:$0]  %s326, 32, %s5, [#allocation4]
    $region45: #{tpu_custom_call.1} parent=1 // pred_fallthru
      _
    // Predicated region
    $region46: #{tpu_custom_call.1} parent=1 // pred_check
      _
    $region47: #{tpu_custom_call.1} parent=1 // pred_check_branch
      %330 = sbr.rel (0) target = $region49
    $region48: #{tpu_custom_call.1} parent=1 // pred_region
      %331 = dma.done [#allocation4], 32
    $region49: #{tpu_custom_call.1} parent=1 // pred_fallthru
      _
    %332 = vsyncpa [#allocation3], 1
    %333 = vsyncpa [#allocation6], 1
    %334 = vsyncpa [#allocation4], 1

</llo_original>
